<compile_context>
chip_gen: v7x
topology: tpu7x:2x2x1
jax: 0.10.0
libtpu: 0.0.40
codegen_flags: <defaults>
</compile_context>

<pallas_src>
import math

import jax
import jax.numpy as jnp
from jax.experimental import pallas as pl
from jax.experimental.pallas import tpu as pltpu


def _dma_view_copy_kernel(x_hbm, o_hbm, sem):
    """Single HBM->HBM DMA of the whole (already reshaped) array.

    No VMEM round-trip, no vector load/store slots, no tiling constraints —
    the DMA engine streams the bytes directly, for any shape and dtype.
    """
    cp = pltpu.make_async_copy(x_hbm, o_hbm, sem)
    cp.start()
    cp.wait()


def _resolve_shape(x, shape):
    """Resolve a torch-style view shape (supports a single -1) and validate."""
    batch_size = x.shape[0]
    total = math.prod(x.shape)
    shape = list(shape)
    if shape.count(-1) > 1:
        raise ValueError("only one dimension can be inferred (-1)")
    if shape.count(-1) == 1:
        known = batch_size * math.prod(d for d in shape if d != -1)
        if known == 0 or total % known != 0:
            raise ValueError(f"cannot view {x.shape} as (batch, {tuple(shape)})")
        shape[shape.index(-1)] = total // known
    out_shape = (batch_size, *shape)
    if math.prod(out_shape) != total:
        raise ValueError(f"cannot view {x.shape} as {out_shape}")
    return out_shape


def view_forward(x, *shape, use_pallas: bool = False):
    """Equivalent of View(*shape).forward(x): out = x.view(batch, *shape).

    Default (use_pallas=False): metadata-only reshape — the recommended
    production path, zero HBM traffic.

    use_pallas=True: materializes the result with a direct HBM->HBM DMA copy
    inside a Pallas kernel (demonstration / forced-materialization path).
    """
    out_shape = _resolve_shape(x, shape)

    # Metadata-only shape change (free). Also used to present the Pallas copy
    # with src/dst of identical shape.
    x_view = x.reshape(out_shape)

    if not use_pallas:
        return x_view

    return pl.pallas_call(
        _dma_view_copy_kernel,
        out_shape=jax.ShapeDtypeStruct(out_shape, x.dtype),
        in_specs=[pl.BlockSpec(memory_space=pl.ANY)],   # raw HBM ref, no auto-DMA
        out_specs=pl.BlockSpec(memory_space=pl.ANY),    # raw HBM ref, no auto-DMA
        scratch_shapes=[pltpu.SemaphoreType.DMA(())],
    )(x_view)


class View:
    """Mirror of the PyTorch module (no parameters)."""

    def __init__(self, *shape, use_pallas: bool = False):
        self.shape = shape
        self.use_pallas = use_pallas

    def __repr__(self):
        return f"View{self.shape}"

    def __call__(self, x):
        return view_forward(x, *self.shape, use_pallas=self.use_pallas)


if __name__ == "__main__":
    key = jax.random.PRNGKey(0)

    # Typical AE usage: flatten NCHW activations.
    # x: (batch=2, channels=4, H=16, W=16) -> View(4*16*16) -> (2, 1024)
    x = jax.random.normal(key, (2, 4, 16, 16), dtype=jnp.float32)

    # Pallas path: single HBM->HBM DMA copy of the reshaped buffer.
    flatten = View(4 * 16 * 16, use_pallas=True)
    y = flatten(x)
    jax.block_until_ready(y)
    assert y.shape == (2, 1024)
    assert jnp.array_equal(y, x.reshape(2, -1))

    # Inverse direction through the Pallas path: un-flatten back to NCHW.
    unflatten = View(4, 16, 16, use_pallas=True)
    z = unflatten(y)
    jax.block_until_ready(z)
    assert z.shape == (2, 4, 16, 16)
    assert jnp.array_equal(z, x)

    # Default (recommended) path: metadata-only reshape, zero HBM traffic.
    y_free = View(4 * 16 * 16)(x)
    jax.block_until_ready(y_free)
    assert jnp.array_equal(y_free, y)

    # -1 inference + odd, non-lane-aligned feature count on the free path.
    w = jax.random.normal(jax.random.PRNGKey(1), (2, 3, 5), dtype=jnp.float32)
    v = View(-1)(w)
    jax.block_until_ready(v)
    assert v.shape == (2, 15)
    assert jnp.array_equal(v, w.reshape(2, 15))

    print("KERNEL_OK")
</pallas_src>

<mosaic_0001>
module attributes {stable_mosaic.version = 11 : i64} {
  func.func @_dma_view_copy_kernel(%arg0: memref<2x1024xf32, #tpu.memory_space<any>>, %arg1: memref<2x1024xf32, #tpu.memory_space<any>>, %arg2: memref<!tpu.dma_semaphore, #tpu.memory_space<semaphore_mem>>) attributes {dimension_semantics = [], scalar_prefetch = 0 : i64, scratch_operands = 1 : i64, tpu.core_type = #tpu.core_type<tc>} {
    tpu.enqueue_dma source(%arg0 : memref<2x1024xf32, #tpu.memory_space<any>>) target(%arg1 : memref<2x1024xf32, #tpu.memory_space<any>>) target_semaphore(%arg2 : memref<!tpu.dma_semaphore, #tpu.memory_space<semaphore_mem>>)
    tpu.wait_dma2 semaphore(%arg2 : memref<!tpu.dma_semaphore, #tpu.memory_space<semaphore_mem>>) src(%arg0 : memref<2x1024xf32, #tpu.memory_space<any>>) dst(%arg1 : memref<2x1024xf32, #tpu.memory_space<any>>)
    return
  }
}

</mosaic_0001>

<llo_original>
// kernel: tpu_custom_call.1
$region0: #{tpu_custom_call.1}
  #allocation0 [shape = 'u32[]', space=smem, size = 0x4, offset = 0x4, fixed_abs, tag = 'smem constant byte address 0x4 - core index']
  #allocation1 [shape = 'u32[144,128]{1,0:T(1,128)}', space=vmem, size = 0x12000, scoped, tag = 'internal scratch']
  #allocation2 [shape = 's32[1]{0}', space=sflag, size = 0x4, scoped, tag = 'scratch operand']
  #allocation3 [shape = 's32[]', space=sflag, size = 0x4, offset = 0, fixed_abs, tag = 'sflag constant byte address 0x0 - dummy sync flag']
  #allocation4 [shape = 'u32[0]{0}', space=smem, size = 0, offset = 0, fixed_abs, tag = 'smem constant byte address 0x0 - null']
  %s0 = inlined_call_operand.hbm [shape: f32[2,1024], index: 0, kind: input, shape index: {}]
  %s1 = inlined_call_operand.hbm [shape: f32[2,1024], index: 1, kind: output, shape index: {}]
  %s2 = sld [smem:[#allocation0]]
  $region2: #{tpu_custom_call.1} parent=0
    _
  %s4 = ssub.s32 1, %s2
  %s5 = scalar_select 0, %s4, %s2
  %s7 = sshll.u32 1, 14
  %s8 = sxor.u32 4294967295, %s7
  %s11 = sshll.u32 3, 24
  %s12 = sxor.u32 4294967295, %s11
  %s13 = sand.u32 0, %s12
  %s15 = sor.u32 %s13, 0
  %18 = dma.general %s0, 256, %s1, [#allocation2], [#allocation3], [#allocation4], %s15, 0
  %s19 = smul.u32 2, 1
  %s20 = smul.u32 %s19, 8
  %s21 = sshll.u32 %s20, 4
  %22 = dma.done [#allocation2], %s21
  %23 = vsyncmov [#allocation2]
  %s24 = vpop.sfrf %23
  %p25 = scmp.eq.s32.totalorder %s24, 0
  %p26 = pneg %p25
  %28 = shalt.err (%p26)

</llo_original>
